<compile_context>
chip_gen: v7x
topology: tpu7x:2x2x1
jax: 0.10.0
libtpu: 0.0.40
codegen_flags: <defaults>
</compile_context>

<pallas_src>
import jax
import jax.numpy as jnp
from jax.experimental import pallas as pl
from jax.experimental.pallas import tpu as pltpu


def _round_up(x: int, m: int) -> int:
    return (x + m - 1) // m * m


def _linear_kernel(x_ref, w_ref, b_ref, o_ref):
    # x_ref: (tm, L)   w_ref: (tn, L)   b_ref: (1, tn)   o_ref: (tm, tn)
    # Contract the (possibly tiny / unaligned) feature dim directly; Mosaic pads
    # and masks the contraction remainder inside vregs, so no wrapper-side L
    # padding is required.
    acc = jax.lax.dot_general(
        x_ref[...], w_ref[...],
        dimension_numbers=(((1,), (1,)), ((), ())),   # x · wᵀ on the MXU
        preferred_element_type=jnp.float32,
    )
    o_ref[...] = (acc + b_ref[...].astype(jnp.float32)).astype(o_ref.dtype)


def weight_prior_conditioned_forward(label, weight, bias):
    """label: (B, labels_dim); weight: (num_pseudo, labels_dim); bias: (num_pseudo,)

    Returns (1, B, num_pseudo) matching PyTorch's `fc(label).unsqueeze(0)`.
    """
    B, L = label.shape
    N, L_w = weight.shape
    assert L_w == L and bias.shape == (N,)

    isz = label.dtype.itemsize

    # ---- Output (lane) padding: only when it buys lane-dense stores ---------
    # Never pad the activations or the contraction dim.  Pad weight/bias rows
    # only for large outputs where unmasked `vst`s matter and the inflation is
    # modest; tiny problems run completely unpadded (full-dim blocks).
    N_pad = N
    if N % 128 != 0 and B * N * isz >= (1 << 20) and _round_up(N, 128) <= 2 * N:
        N_pad = _round_up(N, 128)

    # ---- Tile sizes ----------------------------------------------------------
    # 512 is a multiple of the sublane requirement for every dtype (8/16/32);
    # when the dim is smaller we use the full dim (always a legal block).
    tm = B if B <= 512 else 512
    tn = N_pad if N_pad <= 512 else 512
    grid = (pl.cdiv(B, tm), pl.cdiv(N_pad, tn))

    # ---- Operand prep (no batch / contraction padding) -----------------------
    if N_pad != N:
        w_in = jnp.pad(weight, ((0, N_pad - N), (0, 0)))
        b_in = jnp.pad(bias, (0, N_pad - N)).reshape(1, N_pad)
    else:
        w_in = weight
        b_in = bias.reshape(1, N)

    # ---- VMEM budget: double-buffered tiles + headroom, v7x-safe cap ---------
    need = 2 * isz * (tm * L + tn * L + tn + tm * tn) + (2 << 20)
    vmem_limit = int(min(max(need, 16 << 20), 40 << 20))

    cost = pl.CostEstimate(
        flops=2 * B * N_pad * L,
        transcendentals=0,
        bytes_accessed=isz * (B * L + N_pad * L + N_pad + B * N_pad),
    )

    out = pl.pallas_call(
        _linear_kernel,
        out_shape=jax.ShapeDtypeStruct((B, N_pad), label.dtype),
        grid=grid,
        in_specs=[
            pl.BlockSpec((tm, L), lambda i, j: (i, 0)),    # activations: tiled over B
            pl.BlockSpec((tn, L), lambda i, j: (j, 0)),    # weight: tiled over N only
            pl.BlockSpec((1, tn), lambda i, j: (0, j)),    # bias
        ],
        out_specs=pl.BlockSpec((tm, tn), lambda i, j: (i, j)),
        compiler_params=pltpu.CompilerParams(
            dimension_semantics=("parallel", "parallel"),  # row & N tiles across TCs
            vmem_limit_bytes=vmem_limit,
        ),
        cost_estimate=cost,
    )(label, w_in, b_in)

    if N_pad != N:
        out = out[:, :N]
    return out[None, :, :]                                 # unsqueeze(0)


def init_params(key, num_pseudo_inputs, labels_dim, dtype=jnp.float32):
    """Deterministic init mimicking nn.Linear defaults (uniform +/- 1/sqrt(fan_in))."""
    kw, kb = jax.random.split(key)
    bound = 1.0 / jnp.sqrt(jnp.float32(labels_dim))
    weight = jax.random.uniform(
        kw, (num_pseudo_inputs, labels_dim), dtype=dtype, minval=-bound, maxval=bound
    )
    bias = jax.random.uniform(
        kb, (num_pseudo_inputs,), dtype=dtype, minval=-bound, maxval=bound
    )
    return weight, bias


if __name__ == "__main__":
    key = jax.random.PRNGKey(0)
    k_param, k_label = jax.random.split(key)

    batch = 2
    labels_dim = 4
    num_pseudo_inputs = 8

    weight, bias = init_params(k_param, num_pseudo_inputs, labels_dim)
    label = jax.random.normal(k_label, (batch, labels_dim), dtype=jnp.float32)

    out = weight_prior_conditioned_forward(label, weight, bias)
    out = jax.block_until_ready(out)

    # Reference check against plain JAX linear
    ref = (label @ weight.T + bias)[None, :, :]
    assert out.shape == (1, batch, num_pseudo_inputs), out.shape
    assert jnp.allclose(out, ref, atol=1e-5, rtol=1e-5), "mismatch vs reference"

    print("KERNEL_OK")
</pallas_src>

<mosaic_0001>
module attributes {stable_mosaic.version = 11 : i64} {
  func.func @_linear_kernel(%arg0: i32, %arg1: i32, %arg2: memref<2x4xf32, #tpu.memory_space<vmem>>, %arg3: memref<8x4xf32, #tpu.memory_space<vmem>>, %arg4: memref<1x8xf32, #tpu.memory_space<vmem>>, %arg5: memref<2x8xf32, #tpu.memory_space<vmem>>) attributes {dimension_semantics = [#tpu.dimension_semantics<parallel>, #tpu.dimension_semantics<parallel>], iteration_bounds = array<i64: 1, 1>, scalar_prefetch = 0 : i64, scratch_operands = 0 : i64, tpu.core_type = #tpu.core_type<tc>, window_params = [{transform_indices = @transform_0, window_bounds = array<i64: 2, 4>}, {transform_indices = @transform_1, window_bounds = array<i64: 8, 4>}, {transform_indices = @transform_2, window_bounds = array<i64: 1, 8>}, {transform_indices = @transform_3, window_bounds = array<i64: 2, 8>}]} {
    %c0 = arith.constant 0 : index
    %c0_0 = arith.constant 0 : index
    %0 = vector.load %arg2[%c0, %c0_0] : memref<2x4xf32, #tpu.memory_space<vmem>>, vector<2x4xf32>
    %c0_1 = arith.constant 0 : index
    %c0_2 = arith.constant 0 : index
    %1 = vector.load %arg3[%c0_1, %c0_2] : memref<8x4xf32, #tpu.memory_space<vmem>>, vector<8x4xf32>
    %cst = arith.constant dense<0.000000e+00> : vector<2x8xf32>
    %2 = tpu.matmul %0, %1, %cst {dimension_numbers = #tpu.dot_dimension_numbers<[1], [1], [0], [0], [0, 0, 1, 0], [], []>} : vector<2x4xf32>, vector<8x4xf32>, vector<2x8xf32> -> vector<2x8xf32>
    %c0_3 = arith.constant 0 : index
    %c0_4 = arith.constant 0 : index
    %3 = vector.load %arg4[%c0_3, %c0_4] : memref<1x8xf32, #tpu.memory_space<vmem>>, vector<1x8xf32>
    %4 = vector.broadcast %3 : vector<1x8xf32> to vector<2x8xf32>
    %5 = arith.addf %2, %4 : vector<2x8xf32>
    %c0_5 = arith.constant 0 : index
    %c0_6 = arith.constant 0 : index
    %6 = vector.load %arg5[%c0_5, %c0_6] : memref<2x8xf32, #tpu.memory_space<vmem>>, vector<2x8xf32>
    tpu.vector_store %arg5[%c0_5, %c0_6], %5 {strides = array<i32>} : memref<2x8xf32, #tpu.memory_space<vmem>>, vector<2x8xf32>,
    return
  }
  func.func @transform_0(%arg0: i32, %arg1: i32) -> (i32, i32) {
    %c0_i32 = arith.constant 0 : i32
    %c0_i32_0 = arith.constant 0 : i32
    return %arg0, %c0_i32 : i32, i32
  }
  func.func @transform_1(%arg0: i32, %arg1: i32) -> (i32, i32) {
    %c0_i32 = arith.constant 0 : i32
    %c0_i32_0 = arith.constant 0 : i32
    return %arg1, %c0_i32 : i32, i32
  }
  func.func @transform_2(%arg0: i32, %arg1: i32) -> (i32, i32) {
    %c0_i32 = arith.constant 0 : i32
    %c0_i32_0 = arith.constant 0 : i32
    return %c0_i32, %arg1 : i32, i32
  }
  func.func @transform_3(%arg0: i32, %arg1: i32) -> (i32, i32) {
    %c0_i32 = arith.constant 0 : i32
    return %arg0, %arg1 : i32, i32
  }
}

</mosaic_0001>

<llo_original>
// kernel: tpu_custom_call.1
$region0: #{tpu_custom_call.1}
  #allocation0 [shape = 'u32[]', space=smem, size = 0x4, offset = 0x4, fixed_abs, tag = 'smem constant byte address 0x4 - core index']
  #allocation1 [shape = 'u32[144,128]{1,0:T(1,128)}', space=vmem, size = 0x12000, scoped, tag = 'internal scratch']
  %s0 = inlined_call_operand.vmem [shape: f32[2,4], index: 0, kind: input, shape index: {}]
  %s1 = inlined_call_operand.vmem [shape: f32[8,4], index: 1, kind: input, shape index: {}]
  %s2 = inlined_call_operand.vmem [shape: f32[1,8], index: 2, kind: input, shape index: {}]
  %s3 = inlined_call_operand.hbm [shape: f32[2,8], index: 3, kind: output, shape index: {}]
  %s4 = sld [smem:[#allocation0]]
  $region22: #{tpu_custom_call.1} parent=0
    _
  %s6 = ssub.s32 1, %s4
  %s7 = scalar_select 0, %s6, %s4
  $region1: #{tpu_custom_call.1} parent=0
    #allocation2 [shape = 'u8[1024]{0}', space=vmem, size = 0x400, scoped, tag = 'output window, operand 0, single buffered']
    #allocation3 [shape = 's32[1]{0}', space=sflag, size = 0x4, scoped, tag = 'scoped memory for tpu_custom_call.1']
    %8 = vsyncpa [#allocation3], 0
    // Predicated region
    $region2: #{tpu_custom_call.1} parent=1 // pred_check
      _
    $region3: #{tpu_custom_call.1} parent=1 // pred_check_branch
      %10 = sbr.rel (0) target = $region5
    $region4: #{tpu_custom_call.1} parent=1 // pred_region
      _
    $region5: #{tpu_custom_call.1} parent=1 // pred_fallthru
      _
    // Predicated region
    $region6: #{tpu_custom_call.1} parent=1 // pred_check
      _
    $region7: #{tpu_custom_call.1} parent=1 // pred_check_branch
      %12 = sbr.rel (0) target = $region9
    $region8: #{tpu_custom_call.1} parent=1 // pred_region
      _
    $region9: #{tpu_custom_call.1} parent=1 // pred_fallthru
      _
    // Predicated region
    $region10: #{tpu_custom_call.1} parent=1 // pred_check
      _
    $region11: #{tpu_custom_call.1} parent=1 // pred_check_branch
      %14 = sbr.rel (0) target = $region13
    $region12: #{tpu_custom_call.1} parent=1 // pred_region
      _
    $region13: #{tpu_custom_call.1} parent=1 // pred_fallthru
      _
    %v15 = vld [vmem:[%s0] sm:$0x3]
    %v16 = vld [vmem:[%s1] sm:$0xff]
    %v17 = vld [vmem:[%s2] sm:$0x1]
    %v19 = vlaneseq
    %v20 = vshrl.u32 %v19, 7
    %v21 = vsub.s32 0, %v20
    %v22 = vrot.slane %v17, %v21
    %vm24 = vcmask 31744
    %v26 = vsel %vm24, %v15, 0
    %v29 = vsel %vm24, %v16, 0
    %31 = vmatprep.subr.mxu0 0.0
    %32 = vmatpush1.xpose.msra.mxu0 %v29
    %33 = vmatprep.subr.mxu0 0.0
    %34 = vmatpush1.xpose.msra.mxu0 0.0
    %35 = vmatprep.subr.mxu0 0.0
    %36 = vmatpush1.xpose.msra.mxu0 0.0
    %37 = vmatprep.subr.mxu0 0.0
    %38 = vmatpush1.xpose.msra.mxu0 0.0
    %39 = vmatprep.subr.mxu0 0.0
    %40 = vmatpush1.xpose.msra.mxu0 0.0
    %41 = vmatprep.subr.mxu0 0.0
    %42 = vmatpush1.xpose.msra.mxu0 0.0
    %43 = vmatprep.subr.mxu0 0.0
    %44 = vmatpush1.xpose.msra.mxu0 0.0
    %45 = vmatprep.subr.mxu0 0.0
    %46 = vmatpush1.xpose.msra.mxu0 0.0
    %47 = vmatprep.subr.mxu0 0.0
    %48 = vmatpush1.xpose.msra.mxu0 0.0
    %49 = vmatprep.subr.mxu0 0.0
    %50 = vmatpush1.xpose.msra.mxu0 0.0
    %51 = vmatprep.subr.mxu0 0.0
    %52 = vmatpush1.xpose.msra.mxu0 0.0
    %53 = vmatprep.subr.mxu0 0.0
    %54 = vmatpush1.xpose.msra.mxu0 0.0
    %55 = vmatprep.subr.mxu0 0.0
    %56 = vmatpush1.xpose.msra.mxu0 0.0
    %57 = vmatprep.subr.mxu0 0.0
    %58 = vmatpush1.xpose.msra.mxu0 0.0
    %59 = vmatprep.subr.mxu0 0.0
    %60 = vmatpush1.xpose.msra.mxu0 0.0
    %61 = vmatprep.subr.mxu0 0.0
    %62 = vmatpush1.xpose.msra.mxu0 0.0
    %63 = vmatprep.subr.mxu0 0.0
    %64 = vmatpush1.xpose.msra.mxu0 0.0
    %65 = vmatprep.subr.mxu0 0.0
    %66 = vmatpush1.xpose.msra.mxu0 0.0
    %67 = vmatprep.subr.mxu0 0.0
    %68 = vmatpush1.xpose.msra.mxu0 0.0
    %69 = vmatprep.subr.mxu0 0.0
    %70 = vmatpush1.xpose.msra.mxu0 0.0
    %71 = vmatprep.subr.mxu0 0.0
    %72 = vmatpush1.xpose.msra.mxu0 0.0
    %73 = vmatprep.subr.mxu0 0.0
    %74 = vmatpush1.xpose.msra.mxu0 0.0
    %75 = vmatprep.subr.mxu0 0.0
    %76 = vmatpush1.xpose.msra.mxu0 0.0
    %77 = vmatprep.subr.mxu0 0.0
    %78 = vmatpush1.xpose.msra.mxu0 0.0
    %79 = vmatprep.subr.mxu0 0.0
    %80 = vmatpush1.xpose.msra.mxu0 0.0
    %81 = vmatprep.subr.mxu0 0.0
    %82 = vmatpush1.xpose.msra.mxu0 0.0
    %83 = vmatprep.subr.mxu0 0.0
    %84 = vmatpush1.xpose.msra.mxu0 0.0
    %85 = vmatprep.subr.mxu0 0.0
    %86 = vmatpush1.xpose.msra.mxu0 0.0
    %87 = vmatprep.subr.mxu0 0.0
    %88 = vmatpush1.xpose.msra.mxu0 0.0
    %89 = vmatprep.subr.mxu0 0.0
    %90 = vmatpush1.xpose.msra.mxu0 0.0
    %91 = vmatprep.subr.mxu0 0.0
    %92 = vmatpush1.xpose.msra.mxu0 0.0
    %93 = vmatprep.subr.mxu0 0.0
    %94 = vmatpush1.xpose.msra.mxu0 0.0
    %95 = vmatprep.mubr.f32.mxu0 0.0
    %96 = vmatmul.mubr.f32.gmra.mrb[0].mxu0 %v26
    %v97 = vpop.f32.mrb[0].mxu0
    %v98 = vadd.f32 %v22, %v97
    %v99 = vpop.f32.mrb[0].mxu0
    %100 = vdwg.mxu0
    %vm101 = vcmask 58368
    %102 = vst.msk [vmem:[#allocation2] sm:$0x3] %vm101, %v98
    // Predicated region
    $region14: #{tpu_custom_call.1} parent=1 // pred_check
      _
    $region15: #{tpu_custom_call.1} parent=1 // pred_check_branch
      %104 = sbr.rel (0) target = $region17
    $region16: #{tpu_custom_call.1} parent=1 // pred_region
      %s106 = ssub.s32 32, 32
      %107 = vsyncadd [#allocation3], %s106
      %s109 = sshll.u32 [#allocation2], 4
      %s110 = int_to_ptr.vmem [resolvable:$true] %s109
      %112 = dma.vmem_to_hbm [thread:$0]  %s110, 32, %s3, [#allocation3]
    $region17: #{tpu_custom_call.1} parent=1 // pred_fallthru
      _
    // Predicated region
    $region18: #{tpu_custom_call.1} parent=1 // pred_check
      _
    $region19: #{tpu_custom_call.1} parent=1 // pred_check_branch
      %114 = sbr.rel (0) target = $region21
    $region20: #{tpu_custom_call.1} parent=1 // pred_region
      %115 = dma.done [#allocation3], 32
    $region21: #{tpu_custom_call.1} parent=1 // pred_fallthru
      _
    %116 = vsyncpa [#allocation3], 1

</llo_original>
